<compile_context>
chip_gen: v7x
topology: tpu7x:2x2x1
jax: 0.10.0
libtpu: 0.0.40
codegen_flags: <defaults>
</compile_context>

<pallas_src>
import math

import jax
import jax.numpy as jnp
from jax.experimental import pallas as pl
from jax.experimental.pallas import tpu as pltpu


def _conv_bn_relu_kernel(x_ref, w_ref, b_ref, o_ref):
    # x_ref : (1, TH*W, 9C)        bf16 im2col'ed input rows for this (n, h)
    # w_ref : (OC_tiles, 9C, toc)  bf16 scale-folded weights, grid-resident
    # b_ref : (OC_tiles, 1, toc)   f32 folded BN bias (+ conv bias), resident
    # o_ref : (1, TH*W, toc)       bf16 output block (flattened spatial rows)
    oc = pl.program_id(2)
    # Single MXU matmul: 3x3 conv with dy & dx folded into K = 9C, f32 acc.
    acc = jnp.dot(x_ref[0], w_ref[oc], preferred_element_type=jnp.float32)
    # Epilogue: folded-BN bias + ReLU, one lane-dense bf16 store.
    o_ref[0] = jnp.maximum(acc + b_ref[oc], 0.0).astype(o_ref.dtype)


def _chip_defaults():
    """Per-generation tile targets and VMEM budgets (best effort)."""
    kind = ""
    try:
        kind = jax.devices()[0].device_kind.lower()
    except Exception:
        pass
    if ("v5 lite" in kind) or ("v5e" in kind):
        # v5e: 4x128^2 MXU, mem-bound -> keep tiles modest, 128 MiB VMEM.
        return dict(toc=128, target_rows=128, budget=24 << 20, vmem_cap=48 << 20)
    if ("v7" in kind) or ("7x" in kind):
        # v7x: 2x256^2 MXU but only 64 MiB VMEM per TC -> re-budget.
        return dict(toc=256, target_rows=256, budget=36 << 20, vmem_cap=48 << 20)
    # v6e (default): 2x256^2 MXU, 128 MiB VMEM.
    return dict(toc=256, target_rows=256, budget=48 << 20, vmem_cap=96 << 20)


def _pick_tile_rows(H, W, K9, OCP, toc, target_rows, vmem_budget_bytes):
    """Pick TH (output rows per tile) with TH*W % 8 == 0, TH not overshooting
    the image, and the double-buffered blocks within the per-chip VMEM budget."""
    step = 8 // math.gcd(W, 8)
    TH = max(step, (max(1, target_rows // W) // step) * step)
    TH = min(TH, pl.cdiv(H, step) * step)

    def est(th):
        return (2 * th * W * K9 * 2                 # dbl-buffered bf16 input block
                + 2 * th * W * toc * 2              # dbl-buffered bf16 output block
                + 2 * (OCP // toc) * K9 * toc * 2   # resident bf16 weights (2 bufs)
                + 2 * (OCP // toc) * toc * 4)       # resident f32 bias   (2 bufs)

    while TH > step and est(TH) > vmem_budget_bytes:
        TH -= step
    return TH, est(TH)


def conv_blk_forward(x_nchw, w_oihw, conv_bias, gamma, beta,
                     running_mean, running_var, eps=1e-5,
                     target_rows=None, toc=None):
    """Forward of ConvBlk.  x_nchw: (N, C, H, W) -> (N, OC, H, W)."""
    N, C, H, W = x_nchw.shape
    OC = w_oihw.shape[0]
    K9 = 9 * C

    cfg = _chip_defaults()
    if toc is None:
        toc = cfg["toc"]
    if target_rows is None:
        target_rows = cfg["target_rows"]

    OCP = pl.cdiv(OC, 128) * 128           # lane-dense padded OC
    toc = toc if (OCP % toc == 0) else 128  # toc must divide OCP
    toc = min(toc, OCP)

    TH, block_bytes = _pick_tile_rows(H, W, K9, OCP, toc,
                                      target_rows, cfg["budget"])
    Hp = pl.cdiv(H, TH) * TH               # pad H up to a multiple of TH

    # NCHW -> NHWC, spatial zero pad, full (dy, dx) im2col to K = 9C, bf16.
    # Under jit this fuses into one pass producing the packed input.
    x_nhwc = jnp.transpose(x_nchw, (0, 2, 3, 1))
    x_pad = jnp.pad(x_nhwc, ((0, 0), (1, 1 + Hp - H), (1, 1), (0, 0)))
    cols = [x_pad[:, dy:dy + Hp, dx:dx + W, :]
            for dy in range(3) for dx in range(3)]
    xim = jnp.concatenate(cols, axis=-1).reshape(N, Hp * W, K9)
    xim = xim.astype(jnp.bfloat16)                        # (N, Hp*W, 9C)

    # Fold BN (inference): scale into the weights, bias stays in the epilogue.
    scale = gamma / jnp.sqrt(running_var + eps)           # (OC,)
    bias = (conv_bias - running_mean) * scale + beta      # (OC,)

    # OIHW -> (dy*3C + dx*C + c, oc), fold scale, pad OC, split into OC tiles.
    w_k = jnp.transpose(w_oihw, (2, 3, 1, 0)).reshape(K9, OC)
    w_k = w_k * scale[None, :]
    w_k = jnp.pad(w_k, ((0, 0), (0, OCP - OC)))
    w_k = w_k.reshape(K9, OCP // toc, toc).transpose(1, 0, 2)   # (T, 9C, toc)
    w_k = w_k.astype(jnp.bfloat16)

    bias_p = jnp.pad(bias, (0, OCP - OC)).reshape(OCP // toc, 1, toc)
    bias_p = bias_p.astype(jnp.float32)

    vmem_limit = int(min(cfg["vmem_cap"],
                         max(32 << 20, 2 * block_bytes + (8 << 20))))

    out_flat = pl.pallas_call(
        _conv_bn_relu_kernel,
        out_shape=jax.ShapeDtypeStruct((N, Hp * W, OCP), jnp.bfloat16),
        grid_spec=pltpu.PrefetchScalarGridSpec(
            num_scalar_prefetch=0,
            grid=(N, Hp // TH, OCP // toc),
            in_specs=[
                # input block ignores the (innermost) OC axis -> fetched once
                # per (n, h), auto double-buffered across tiles.
                pl.BlockSpec((1, TH * W, K9), lambda n, h, oc: (n, h, 0)),
                # weights & bias: constant index map -> grid-resident (one DMA).
                pl.BlockSpec((OCP // toc, K9, toc), lambda n, h, oc: (0, 0, 0)),
                pl.BlockSpec((OCP // toc, 1, toc), lambda n, h, oc: (0, 0, 0)),
            ],
            out_specs=pl.BlockSpec((1, TH * W, toc),
                                   lambda n, h, oc: (n, h, oc)),
        ),
        compiler_params=pltpu.CompilerParams(
            dimension_semantics=("parallel", "parallel", "arbitrary"),
            vmem_limit_bytes=vmem_limit),
    )(xim, w_k, bias_p)

    # Slice off Hp/OCP padding and return NCHW / input dtype to match the
    # PyTorch module interface (an NHWC/bf16 consumer could skip this).
    out = out_flat.reshape(N, Hp, W, OCP)[:, :H, :, :OC]
    return jnp.transpose(out, (0, 3, 1, 2)).astype(x_nchw.dtype)


def _reference(x_nchw, w_oihw, conv_bias, gamma, beta,
               running_mean, running_var, eps=1e-5):
    """Pure-JAX f32 reference (XLA conv) for correctness check."""
    y = jax.lax.conv_general_dilated(
        x_nchw, w_oihw, window_strides=(1, 1), padding=((1, 1), (1, 1)),
        dimension_numbers=("NCHW", "OIHW", "NCHW"))
    y = y + conv_bias[None, :, None, None]
    y = (y - running_mean[None, :, None, None]) / jnp.sqrt(
        running_var[None, :, None, None] + eps)
    y = y * gamma[None, :, None, None] + beta[None, :, None, None]
    return jnp.maximum(y, 0.0)


def _make_params(key, N, IC, OC, H, W):
    k_x, k_w, k_b, k_g, k_be, k_m, k_v = jax.random.split(key, 7)
    x = jax.random.normal(k_x, (N, IC, H, W), dtype=jnp.float32)
    w = jax.random.normal(k_w, (OC, IC, 3, 3), dtype=jnp.float32) * 0.1
    conv_bias = jax.random.normal(k_b, (OC,), dtype=jnp.float32) * 0.1
    gamma = 1.0 + 0.1 * jax.random.normal(k_g, (OC,), dtype=jnp.float32)
    beta = 0.1 * jax.random.normal(k_be, (OC,), dtype=jnp.float32)
    running_mean = 0.1 * jax.random.normal(k_m, (OC,), dtype=jnp.float32)
    running_var = jnp.abs(1.0 + 0.1 * jax.random.normal(k_v, (OC,),
                                                        dtype=jnp.float32))
    return x, w, conv_bias, gamma, beta, running_mean, running_var


if __name__ == "__main__":
    fwd = jax.jit(conv_blk_forward)
    key = jax.random.PRNGKey(0)
    k1, k2 = jax.random.split(key)

    # Main test: the shapes the module implies (stem-like shallow-C block).
    args1 = _make_params(k1, N=2, IC=4, OC=8, H=16, W=16)
    out1 = jax.block_until_ready(fwd(*args1))
    ref1 = _reference(*args1)
    assert out1.shape == (2, 8, 16, 16)
    # bf16 MXU inputs + bf16 output -> looser tolerance vs f32 reference.
    assert jnp.allclose(out1, ref1, atol=3e-2, rtol=3e-2), "mismatch (test 1)"

    # Second test: exercises OC padding to >1 lane tile, H-tile padding and a
    # non-multiple-of-8 W (TH*W sublane alignment logic).
    args2 = _make_params(k2, N=1, IC=5, OC=130, H=7, W=12)
    out2 = jax.block_until_ready(fwd(*args2))
    ref2 = _reference(*args2)
    assert out2.shape == (1, 130, 7, 12)
    assert jnp.allclose(out2, ref2, atol=3e-2, rtol=3e-2), "mismatch (test 2)"

    print("KERNEL_OK")
</pallas_src>

<mosaic_0001>
module attributes {stable_mosaic.version = 11 : i64} {
  func.func @_conv_bn_relu_kernel(%arg0: i32, %arg1: i32, %arg2: i32, %arg3: memref<1x256x36xbf16, #tpu.memory_space<vmem>>, %arg4: memref<1x36x128xbf16, #tpu.memory_space<vmem>>, %arg5: memref<1x1x128xf32, #tpu.memory_space<vmem>>, %arg6: memref<1x256x128xbf16, #tpu.memory_space<vmem>>) attributes {dimension_semantics = [#tpu.dimension_semantics<parallel>, #tpu.dimension_semantics<parallel>, #tpu.dimension_semantics<arbitrary>], iteration_bounds = array<i64: 2, 1, 1>, scalar_prefetch = 0 : i64, scratch_operands = 0 : i64, tpu.core_type = #tpu.core_type<tc>, window_params = [{transform_indices = @transform_0, window_bounds = array<i64: 1, 256, 36>}, {pipeline_mode = #tpu.pipeline_mode<synchronous>, transform_indices = @transform_1, window_bounds = array<i64: 1, 36, 128>}, {pipeline_mode = #tpu.pipeline_mode<synchronous>, transform_indices = @transform_2, window_bounds = array<i64: 1, 1, 128>}, {transform_indices = @transform_3, window_bounds = array<i64: 1, 256, 128>}]} {
    %c0 = arith.constant 0 : index
    %c0_0 = arith.constant 0 : index
    %c0_1 = arith.constant 0 : index
    %0 = vector.load %arg3[%c0, %c0_0, %c0_1] : memref<1x256x36xbf16, #tpu.memory_space<vmem>>, vector<1x256x36xbf16>
    %1 = vector.shape_cast %0 : vector<1x256x36xbf16> to vector<256x36xbf16>
    %2 = arith.index_cast %arg2 : i32 to index
    %c0_2 = arith.constant 0 : index
    %c0_3 = arith.constant 0 : index
    %3 = vector.load %arg4[%2, %c0_2, %c0_3] : memref<1x36x128xbf16, #tpu.memory_space<vmem>>, vector<1x36x128xbf16>
    %4 = vector.shape_cast %3 : vector<1x36x128xbf16> to vector<36x128xbf16>
    %cst = arith.constant dense<0.000000e+00> : vector<256x128xf32>
    %5 = tpu.matmul %1, %4, %cst {dimension_numbers = #tpu.dot_dimension_numbers<[1], [0], [0], [1], [0, 0, 1, 1], [], []>} : vector<256x36xbf16>, vector<36x128xbf16>, vector<256x128xf32> -> vector<256x128xf32>
    %6 = arith.index_cast %arg2 : i32 to index
    %c0_4 = arith.constant 0 : index
    %c0_5 = arith.constant 0 : index
    %7 = vector.load %arg5[%6, %c0_4, %c0_5] : memref<1x1x128xf32, #tpu.memory_space<vmem>>, vector<1x1x128xf32>
    %8 = vector.shape_cast %7 : vector<1x1x128xf32> to vector<1x128xf32>
    %9 = vector.broadcast %8 : vector<1x128xf32> to vector<256x128xf32>
    %10 = arith.addf %5, %9 : vector<256x128xf32>
    %cst_6 = arith.constant 0.000000e+00 : f32
    %11 = vector.broadcast %cst_6 : f32 to vector<256x128xf32>
    %12 = arith.maximumf %10, %11 : vector<256x128xf32>
    %13 = arith.truncf %12 : vector<256x128xf32> to vector<256x128xbf16>
    %c0_7 = arith.constant 0 : index
    %c0_8 = arith.constant 0 : index
    %c0_9 = arith.constant 0 : index
    %14 = vector.load %arg6[%c0_7, %c0_8, %c0_9] : memref<1x256x128xbf16, #tpu.memory_space<vmem>>, vector<1x256x128xbf16>
    %15 = vector.shape_cast %14 : vector<1x256x128xbf16> to vector<256x128xbf16>
    %16 = vector.shape_cast %13 : vector<256x128xbf16> to vector<1x256x128xbf16>
    tpu.vector_store %arg6[%c0_7, %c0_8, %c0_9], %16 {strides = array<i32>} : memref<1x256x128xbf16, #tpu.memory_space<vmem>>, vector<1x256x128xbf16>,
    return
  }
  func.func @transform_0(%arg0: i32, %arg1: i32, %arg2: i32) -> (i32, i32, i32) {
    %c0_i32 = arith.constant 0 : i32
    %c0_i32_0 = arith.constant 0 : i32
    return %arg0, %arg1, %c0_i32 : i32, i32, i32
  }
  func.func @transform_1(%arg0: i32, %arg1: i32, %arg2: i32) -> (i32, i32, i32) {
    %c0_i32 = arith.constant 0 : i32
    %c0_i32_0 = arith.constant 0 : i32
    %c0_i32_1 = arith.constant 0 : i32
    %c0_i32_2 = arith.constant 0 : i32
    return %c0_i32, %c0_i32_0, %c0_i32_1 : i32, i32, i32
  }
  func.func @transform_2(%arg0: i32, %arg1: i32, %arg2: i32) -> (i32, i32, i32) {
    %c0_i32 = arith.constant 0 : i32
    %c0_i32_0 = arith.constant 0 : i32
    %c0_i32_1 = arith.constant 0 : i32
    %c0_i32_2 = arith.constant 0 : i32
    return %c0_i32, %c0_i32_0, %c0_i32_1 : i32, i32, i32
  }
  func.func @transform_3(%arg0: i32, %arg1: i32, %arg2: i32) -> (i32, i32, i32) {
    %c0_i32 = arith.constant 0 : i32
    return %arg0, %arg1, %arg2 : i32, i32, i32
  }
}

</mosaic_0001>

<llo_original>
// kernel: conv_blk_forward.1
$region0: #{conv_blk_forward.1}
  #allocation0 [shape = 'u32[]', space=smem, size = 0x4, offset = 0x4, fixed_abs, tag = 'smem constant byte address 0x4 - core index']
  #allocation1 [shape = 'u32[144,128]{1,0:T(1,128)}', space=vmem, size = 0x12000, scoped, tag = 'internal scratch']
  %s0 = inlined_call_operand.vmem [shape: bf16[2,256,36], index: 0, kind: input, shape index: {}]
  %s1 = inlined_call_operand.vmem [shape: bf16[1,36,128], index: 1, kind: input, shape index: {}]
  %s2 = inlined_call_operand.vmem [shape: f32[1,1,128], index: 2, kind: input, shape index: {}]
  %s3 = inlined_call_operand.vmem [shape: bf16[2,256,128], index: 3, kind: output, shape index: {}]
  %s4 = sld [smem:[#allocation0]]
  $region45: #{conv_blk_forward.1} parent=0
    _
  %s6 = ssub.s32 1, %s4
  %s7 = scalar_select 0, %s6, %s4
  loop: start=0, step=1, limit=4
  $region2: #{conv_blk_forward.1} parent=0 // loop_pre_header
    _
  $region3: #{conv_blk_forward.1} parent=0 // loop_header
    %s9 = sphi 0, %s13
    %p10 = scmp.ge.s32.totalorder %s9, 4
    %s16 = sphi 0, %s35
    %s17 = sphi 0, %s31
    %s18 = sphi 0, %s27
    %s19 = sphi 0, %s16
    %s20 = sphi 0, %s17
    %s21 = sphi 0, %s18
    %s22 = sphi 0, %s19
    %s23 = sphi 0, %s20
    %s24 = sphi 0, %s21
    %s40 = sphi 0, %s42
    %s43 = sphi 0, %s40
    %s44 = sphi 0, %s43
    %s60 = sphi 0, %s44
    %s64 = sphi 0, %s64
    %s66 = sphi 0, %s64
    %s67 = sphi 0, %s66
    %s81 = sphi 0, %s67
    %s85 = sphi 0, %s85
    %s87 = sphi 0, %s85
    %s88 = sphi 0, %s87
    %s102 = sphi 0, %s88
    %s112 = sphi 0, %s114
    %s115 = sphi 0, %s112
    %s116 = sphi 0, %s115
    %s132 = sphi 0, %s116
  $region4: #{conv_blk_forward.1} parent=0 // loop_header_branch
    %12 = sbr.rel (%p10) target = $region8
  $region5: #{conv_blk_forward.1} parent=0 // loop_body
    %s14 = ssub.s32 %s9, 1
    %s15 = ssub.s32 %s9, 2
    %s25 = sadd.s32 1, %s18
    %p26 = scmp.ge.s32.totalorder %s25, 1
    %s27 = scalar_select %p26, 0, %s25
    %s28 = sadd.s32 1, %s17
    %s29 = scalar_select %p26, %s28, %s17
    %p30 = scmp.ge.s32.totalorder %s29, 1
    %s31 = scalar_select %p30, 0, %s29
    %s32 = sadd.s32 1, %s16
    %s33 = scalar_select %p30, %s32, %s16
    %p34 = scmp.ge.s32.totalorder %s33, 2
    %s35 = scalar_select %p34, 0, %s33
    %s36 = ssub.s32 %s16, %s35
    %s37 = ssub.s32 %s17, %s31
    %s38 = sor.u32 %s36, %s37
    %p39 = scmp.eq.s32.totalorder %s38, 0
    %s41 = sadd.s32 %s40, 1
    %s42 = scalar_select %p39, %s40, %s41
    %p45 = pneg %p39
    %p46 = scmp.eq.s32.totalorder %s9, 1
    %p47 = por %p45, %p46
    %p48 = scmp.ne.s32.totalorder %s40, %s43
    %p49 = scmp.eq.s32.totalorder %s9, 0
    %p50 = por %p48, %p49
    %p51 = scmp.ne.s32.totalorder %s40, %s43
    %p52 = scmp.eq.s32.totalorder %s14, 1
    %p53 = por %p51, %p52
    %p54 = scmp.ne.s32.totalorder %s43, %s44
    %p55 = scmp.eq.s32.totalorder %s14, 0
    %p56 = por %p54, %p55
    %p57 = scmp.ne.s32.totalorder %s43, %s44
    %p58 = scmp.eq.s32.totalorder %s15, 1
    %p59 = por %p57, %p58
    %p61 = scmp.ne.s32.totalorder %s44, %s60
    %p62 = scmp.eq.s32.totalorder %s15, 0
    %p63 = por %p61, %p62
    %s65 = sadd.s32 %s64, 1
    %p68 = scmp.eq.s32.totalorder %s9, 1
    %p69 = scmp.ne.s32.totalorder %s64, %s66
    %p70 = scmp.eq.s32.totalorder %s9, 0
    %p71 = por %p69, %p70
    %p72 = scmp.ne.s32.totalorder %s64, %s66
    %p73 = scmp.eq.s32.totalorder %s14, 1
    %p74 = por %p72, %p73
    %p75 = scmp.ne.s32.totalorder %s66, %s67
    %p76 = scmp.eq.s32.totalorder %s14, 0
    %p77 = por %p75, %p76
    %p78 = scmp.ne.s32.totalorder %s66, %s67
    %p79 = scmp.eq.s32.totalorder %s15, 1
    %p80 = por %p78, %p79
    %p82 = scmp.ne.s32.totalorder %s67, %s81
    %p83 = scmp.eq.s32.totalorder %s15, 0
    %p84 = por %p82, %p83
    %s86 = sadd.s32 %s85, 1
    %p89 = scmp.eq.s32.totalorder %s9, 1
    %p90 = scmp.ne.s32.totalorder %s85, %s87
    %p91 = scmp.eq.s32.totalorder %s9, 0
    %p92 = por %p90, %p91
    %p93 = scmp.ne.s32.totalorder %s85, %s87
    %p94 = scmp.eq.s32.totalorder %s14, 1
    %p95 = por %p93, %p94
    %p96 = scmp.ne.s32.totalorder %s87, %s88
    %p97 = scmp.eq.s32.totalorder %s14, 0
    %p98 = por %p96, %p97
    %p99 = scmp.ne.s32.totalorder %s87, %s88
    %p100 = scmp.eq.s32.totalorder %s15, 1
    %p101 = por %p99, %p100
    %p103 = scmp.ne.s32.totalorder %s88, %s102
    %p104 = scmp.eq.s32.totalorder %s15, 0
    %p105 = por %p103, %p104
    %s106 = ssub.s32 %s16, %s35
    %s107 = ssub.s32 %s17, %s31
    %s108 = sor.u32 %s106, %s107
    %s109 = ssub.s32 %s18, %s27
    %s110 = sor.u32 %s108, %s109
    %p111 = scmp.eq.s32.totalorder %s110, 0
    %s113 = sadd.s32 %s112, 1
    %s114 = scalar_select %p111, %s112, %s113
    %p117 = pneg %p111
    %p118 = scmp.eq.s32.totalorder %s9, 1
    %p119 = por %p117, %p118
    %p120 = scmp.ne.s32.totalorder %s112, %s115
    %p121 = scmp.eq.s32.totalorder %s9, 0
    %p122 = por %p120, %p121
    %p123 = scmp.ne.s32.totalorder %s112, %s115
    %p124 = scmp.eq.s32.totalorder %s14, 1
    %p125 = por %p123, %p124
    %p126 = scmp.ne.s32.totalorder %s115, %s116
    %p127 = scmp.eq.s32.totalorder %s14, 0
    %p128 = por %p126, %p127
    %p129 = scmp.ne.s32.totalorder %s115, %s116
    %p130 = scmp.eq.s32.totalorder %s15, 1
    %p131 = por %p129, %p130
    %p133 = scmp.ne.s32.totalorder %s116, %s132
    %p134 = scmp.eq.s32.totalorder %s15, 0
    %p135 = por %p133, %p134
    %p136 = scmp.le.s32.totalorder 1, %s9
    %p137 = scmp.lt.s32.totalorder %s9, 3
    %p138 = pnand %p136, %p137
    %p139 = pneg %p138
    // Predicated region
    $region9: #{conv_blk_forward.1} parent=5 // pred_check
      _
    $region10: #{conv_blk_forward.1} parent=5 // pred_check_branch
      %141 = sbr.rel (%p138) target = $region12
    $region11: #{conv_blk_forward.1} parent=5 // pred_region
      %s142 = ssub.s32 %s9, 1
      // Predicated region
      $region13: #{conv_blk_forward.1} parent=11 // pred_check
        %p143 = pneg %p77
      $region14: #{conv_blk_forward.1} parent=11 // pred_check_branch
        %145 = sbr.rel (%p143) target = $region16
      $region15: #{conv_blk_forward.1} parent=11 // pred_region
        _
      $region16: #{conv_blk_forward.1} parent=11 // pred_fallthru
        _
      // Predicated region
      $region17: #{conv_blk_forward.1} parent=11 // pred_check
        %p146 = pneg %p98
      $region18: #{conv_blk_forward.1} parent=11 // pred_check_branch
        %148 = sbr.rel (%p146) target = $region20
      $region19: #{conv_blk_forward.1} parent=11 // pred_region
        _
      $region20: #{conv_blk_forward.1} parent=11 // pred_fallthru
        _
    $region12: #{conv_blk_forward.1} parent=5 // pred_fallthru
      _
    %p149 = scmp.lt.s32.totalorder %s9, 2
    // Predicated region
    $region21: #{conv_blk_forward.1} parent=5 // pred_check
      %p150 = pneg %p149
    $region22: #{conv_blk_forward.1} parent=5 // pred_check_branch
      %152 = sbr.rel (%p150) target = $region24
    $region23: #{conv_blk_forward.1} parent=5 // pred_region
      // Predicated region
      $region25: #{conv_blk_forward.1} parent=23 // pred_check
        %p153 = pneg %p50
      $region26: #{conv_blk_forward.1} parent=23 // pred_check_branch
        %155 = sbr.rel (%p153) target = $region28
      $region27: #{conv_blk_forward.1} parent=23 // pred_region
        %s156 = smul.u32 32, %s17
        %p157 = scmp.lt.s32.totalorder %s16, 1
        %s158 = scalar_select %p157, %s16, 1
        %p159 = scmp.lt.s32.totalorder %s156, 31
        %s160 = scalar_select %p159, %s156, 31
        %s161 = smul.addr %s158, 32
        %s162 = sadd.s32 %s160, %s161
        %s163 = smul.addr %s162, 4
        %s164 = scalar_lea.vmem %s0, %s163
        %s165 = smul.u32 32, %s17
      $region28: #{conv_blk_forward.1} parent=23 // pred_fallthru
        _
    $region24: #{conv_blk_forward.1} parent=5 // pred_fallthru
      _
    %p166 = scmp.le.s32.totalorder 1, %s9
    %p167 = scmp.lt.s32.totalorder %s9, 3
    %p168 = pnand %p166, %p167
    %p169 = pneg %p168
    // Predicated region
    $region29: #{conv_blk_forward.1} parent=5 // pred_check
      _
    $region30: #{conv_blk_forward.1} parent=5 // pred_check_branch
      %171 = sbr.rel (%p168) target = $region32
    $region31: #{conv_blk_forward.1} parent=5 // pred_region
      %s172 = ssub.s32 %s9, 1
      %s173 = smul.u32 32, %s20
      %p174 = scmp.lt.s32.totalorder %s19, 1
      %s175 = scalar_select %p174, %s19, 1
      %p176 = scmp.lt.s32.totalorder %s173, 31
      %s177 = scalar_select %p176, %s173, 31
      %s178 = smul.addr %s175, 32
      %s179 = sadd.s32 %s177, %s178
      %s180 = smul.addr %s179, 4
      %s181 = scalar_lea.vmem %s0, %s180
      %p182 = pneg %p56
      %p183 = pneg %p53
      %p184 = pneg %p77
      %p185 = pneg %p74
      %p186 = pneg %p98
      %p187 = pneg %p95
      %p188 = pneg %p128
      %p189 = pneg %p125
      %s190 = smul.u32 32, %s20
      %p191 = scmp.lt.s32.totalorder %s19, 1
      %s192 = scalar_select %p191, %s19, 1
      %p193 = scmp.lt.s32.totalorder %s190, 31
      %s194 = scalar_select %p193, %s190, 31
      %p195 = scmp.lt.s32.totalorder %s21, 0
      %s196 = scalar_select %p195, %s21, 0
      %s197 = sadd.s32 %s196, %s194
      %s198 = smul.addr %s192, 32
      %s199 = sadd.s32 %s197, %s198
      %s200 = smul.addr %s199, 4
      %s201 = scalar_lea.vmem %s3, %s200
      %s202 = smul.u32 32, %s20
      %p203 = scmp.lt.s32.totalorder %s19, 1
      %s204 = scalar_select %p203, %s19, 1
      %p205 = scmp.lt.s32.totalorder %s202, 31
      %s206 = scalar_select %p205, %s202, 31
      %s207 = smul.addr %s204, 32
      %s208 = sadd.s32 %s206, %s207
      %s209 = smul.addr %s208, 4
      %s210 = scalar_lea.vmem %s0, %s209
      %s211 = smul.u32 32, %s20
      %s212 = smul.u32 32, %s20
      %p213 = scmp.lt.s32.totalorder %s19, 1
      %s214 = scalar_select %p213, %s19, 1
      %p215 = scmp.lt.s32.totalorder %s212, 31
      %s216 = scalar_select %p215, %s212, 31
      %p217 = scmp.lt.s32.totalorder %s21, 0
      %s218 = scalar_select %p217, %s21, 0
      %s219 = sadd.s32 %s218, %s216
      %s220 = smul.addr %s214, 32
      %s221 = sadd.s32 %s219, %s220
      %s222 = smul.addr %s221, 4
      %s223 = scalar_lea.vmem %s3, %s222
      %s224 = smul.u32 32, %s20
      %v226 = vld [vmem:[%s210] sm:$0xf]
      %v227 = vld [vmem:[%s210 + $0x4] sm:$0xf]
      %v228 = vld [vmem:[%s210 + $0x8] sm:$0xf]
      %v229 = vld [vmem:[%s210 + $0xc] sm:$0xf]
      %v230 = vld [vmem:[%s210 + $0x10] sm:$0xf]
      %v231 = vld [vmem:[%s210 + $0x14] sm:$0xf]
      %v232 = vld [vmem:[%s210 + $0x18] sm:$0xf]
      %v233 = vld [vmem:[%s210 + $0x1c] sm:$0xf]
      %v234 = vld [vmem:[%s210 + $0x20] sm:$0xf]
      %v235 = vld [vmem:[%s210 + $0x24] sm:$0xf]
      %v236 = vld [vmem:[%s210 + $0x28] sm:$0xf]
      %v237 = vld [vmem:[%s210 + $0x2c] sm:$0xf]
      %v238 = vld [vmem:[%s210 + $0x30] sm:$0xf]
      %v239 = vld [vmem:[%s210 + $0x34] sm:$0xf]
      %v240 = vld [vmem:[%s210 + $0x38] sm:$0xf]
      %v241 = vld [vmem:[%s210 + $0x3c] sm:$0xf]
      %v242 = vld [vmem:[%s210 + $0x40] sm:$0xf]
      %v243 = vld [vmem:[%s210 + $0x44] sm:$0xf]
      %v244 = vld [vmem:[%s210 + $0x48] sm:$0xf]
      %v245 = vld [vmem:[%s210 + $0x4c] sm:$0xf]
      %v246 = vld [vmem:[%s210 + $0x50] sm:$0xf]
      %v247 = vld [vmem:[%s210 + $0x54] sm:$0xf]
      %v248 = vld [vmem:[%s210 + $0x58] sm:$0xf]
      %v249 = vld [vmem:[%s210 + $0x5c] sm:$0xf]
      %v250 = vld [vmem:[%s210 + $0x60] sm:$0xf]
      %v251 = vld [vmem:[%s210 + $0x64] sm:$0xf]
      %v252 = vld [vmem:[%s210 + $0x68] sm:$0xf]
      %v253 = vld [vmem:[%s210 + $0x6c] sm:$0xf]
      %v254 = vld [vmem:[%s210 + $0x70] sm:$0xf]
      %v255 = vld [vmem:[%s210 + $0x74] sm:$0xf]
      %v256 = vld [vmem:[%s210 + $0x78] sm:$0xf]
      %v257 = vld [vmem:[%s210 + $0x7c] sm:$0xf]
      %s258 = smul.u32 %s21, 5
      %s259 = smul.addr %s258, 4
      %s260 = scalar_lea.vmem %s1, %s259
      %v261 = vld [vmem:[%s260] sm:$0xf]
      %v262 = vld [vmem:[%s260 + $0x4] sm:$0xf]
      %v263 = vld [vmem:[%s260 + $0x8] sm:$0xf]
      %v264 = vld [vmem:[%s260 + $0xc] sm:$0xf]
      %v265 = vld [vmem:[%s260 + $0x10] sm:$0x3]
      %s266 = scalar_lea.vmem %s2, %s21
      %v267 = vld [vmem:[%s266] sm:$0x1]
      %v269 = vlaneseq
      %v270 = vshrl.u32 %v269, 7
      %v271 = vsub.s32 0, %v270
      %v272 = vrot.slane %v267, %v271
      %v306 = vunpack.c.l.b16 %v226
      %v307 = vunpack.c.l.b16 %v227
      %v308 = vunpack.c.l.b16 %v228
      %v309 = vunpack.c.l.b16 %v229
      %v310 = vunpack.c.l.b16 %v230
      %v311 = vunpack.c.l.b16 %v231
      %v312 = vunpack.c.l.b16 %v232
      %v313 = vunpack.c.l.b16 %v233
      %v314 = vunpack.c.l.b16 %v234
      %v315 = vunpack.c.l.b16 %v235
      %v316 = vunpack.c.l.b16 %v236
      %v317 = vunpack.c.l.b16 %v237
      %v318 = vunpack.c.l.b16 %v238
      %v319 = vunpack.c.l.b16 %v239
      %v320 = vunpack.c.l.b16 %v240
      %v321 = vunpack.c.l.b16 %v241
      %v322 = vunpack.c.l.b16 %v242
      %v323 = vunpack.c.l.b16 %v243
      %v324 = vunpack.c.l.b16 %v244
      %v325 = vunpack.c.l.b16 %v245
      %v326 = vunpack.c.l.b16 %v246
      %v327 = vunpack.c.l.b16 %v247
      %v328 = vunpack.c.l.b16 %v248
      %v329 = vunpack.c.l.b16 %v249
      %v330 = vunpack.c.l.b16 %v250
      %v331 = vunpack.c.l.b16 %v251
      %v332 = vunpack.c.l.b16 %v252
      %v333 = vunpack.c.l.b16 %v253
      %v334 = vunpack.c.l.b16 %v254
      %v335 = vunpack.c.l.b16 %v255
      %v336 = vunpack.c.l.b16 %v256
      %v337 = vunpack.c.l.b16 %v257
      %v338 = vpack.c.b16 %v307, %v306
      %v339 = vpack.c.b16 %v309, %v308
      %v340 = vpack.c.b16 %v311, %v310
      %v341 = vpack.c.b16 %v313, %v312
      %v342 = vpack.c.b16 %v315, %v314
      %v343 = vpack.c.b16 %v317, %v316
      %v344 = vpack.c.b16 %v319, %v318
      %v345 = vpack.c.b16 %v321, %v320
      %v346 = vpack.c.b16 %v323, %v322
      %v347 = vpack.c.b16 %v325, %v324
      %v348 = vpack.c.b16 %v327, %v326
      %v349 = vpack.c.b16 %v329, %v328
      %v350 = vpack.c.b16 %v331, %v330
      %v351 = vpack.c.b16 %v333, %v332
      %v352 = vpack.c.b16 %v335, %v334
      %v353 = vpack.c.b16 %v337, %v336
      %v359 = vunpack.c.l.b16 %v261
      %v360 = vunpack.c.l.b16 %v262
      %v361 = vunpack.c.l.b16 %v263
      %v362 = vunpack.c.l.b16 %v264
      %v363 = vunpack.c.l.b16 %v265
      %v364 = vpack.c.b16 %v360, %v359
      %v365 = vpack.c.b16 %v362, %v361
      %v366 = vpack.c.b16 %v363, %v363
      %vm369 = vcmask 293888
      %v371 = vsel %vm369, %v338, 0
      %v374 = vsel %vm369, %v339, 0
      %v377 = vsel %vm369, %v340, 0
      %v380 = vsel %vm369, %v341, 0
      %v383 = vsel %vm369, %v342, 0
      %v386 = vsel %vm369, %v343, 0
      %v389 = vsel %vm369, %v344, 0
      %v392 = vsel %vm369, %v345, 0
      %v395 = vsel %vm369, %v346, 0
      %v398 = vsel %vm369, %v347, 0
      %v401 = vsel %vm369, %v348, 0
      %v404 = vsel %vm369, %v349, 0
      %v407 = vsel %vm369, %v350, 0
      %v410 = vsel %vm369, %v351, 0
      %v413 = vsel %vm369, %v352, 0
      %v416 = vsel %vm369, %v353, 0
      %vm418 = vcmask 1041408
      %v420 = vsel %vm418, %v366, 0
      %422 = vmatprep.subr.bf16.mxu0 0
      %423 = vmatpush1.bf16.msra.mxu0 %v364
      %424 = vmatprep.subr.bf16.mxu0 0
      %425 = vmatpush1.bf16.msra.mxu0 %v365
      %426 = vmatprep.subr.bf16.mxu0 0
      %427 = vmatpush1.bf16.msra.mxu0 %v420
      %428 = vmatprep.subr.bf16.mxu0 0
      %429 = vmatpush1.bf16.msra.mxu0 0
      %430 = vmatprep.subr.bf16.mxu0 0
      %431 = vmatpush1.bf16.msra.mxu0 0
      %432 = vmatprep.subr.bf16.mxu0 0
      %433 = vmatpush1.bf16.msra.mxu0 0
      %434 = vmatprep.subr.bf16.mxu0 0
      %435 = vmatpush1.bf16.msra.mxu0 0
      %436 = vmatprep.subr.bf16.mxu0 0
      %437 = vmatpush1.bf16.msra.mxu0 0
      %438 = vmatprep.subr.bf16.mxu0 0
      %439 = vmatpush1.bf16.msra.mxu0 0
      %440 = vmatprep.subr.bf16.mxu0 0
      %441 = vmatpush1.bf16.msra.mxu0 0
      %442 = vmatprep.subr.bf16.mxu0 0
      %443 = vmatpush1.bf16.msra.mxu0 0
      %444 = vmatprep.subr.bf16.mxu0 0
      %445 = vmatpush1.bf16.msra.mxu0 0
      %446 = vmatprep.subr.bf16.mxu0 0
      %447 = vmatpush1.bf16.msra.mxu0 0
      %448 = vmatprep.subr.bf16.mxu0 0
      %449 = vmatpush1.bf16.msra.mxu0 0
      %450 = vmatprep.subr.bf16.mxu0 0
      %451 = vmatpush1.bf16.msra.mxu0 0
      %452 = vmatprep.subr.bf16.mxu0 0
      %453 = vmatpush1.bf16.msra.mxu0 0
      %454 = vmatprep.mubr.bf16.mxu0 0
      %455 = vmatmul.mubr.bf16.gmra.mrb[0].mxu0 %v371
      %v456 = vpop.f32.mrb[0].mxu0
      %v457 = vadd.f32 %v272, %v456
      %v458 = vpop.f32.mrb[0].mxu0
      %v459 = vpop.f32.mrb[0].mxu0
      %v460 = vadd.f32 %v272, %v459
      %v461 = vpop.f32.mrb[0].mxu0
      %462 = vmatprep.mubr.bf16.mxu0 0
      %463 = vmatmul.mubr.bf16.gmra.mrb[0].mxu0 %v374
      %v464 = vpop.f32.mrb[0].mxu0
      %v465 = vadd.f32 %v272, %v464
      %v466 = vpop.f32.mrb[0].mxu0
      %v467 = vpop.f32.mrb[0].mxu0
      %v468 = vadd.f32 %v272, %v467
      %v469 = vpop.f32.mrb[0].mxu0
      %470 = vmatprep.mubr.bf16.mxu0 0
      %471 = vmatmul.mubr.bf16.gmra.mrb[0].mxu0 %v377
      %v472 = vpop.f32.mrb[0].mxu0
      %v473 = vadd.f32 %v272, %v472
      %v474 = vpop.f32.mrb[0].mxu0
      %v475 = vpop.f32.mrb[0].mxu0
      %v476 = vadd.f32 %v272, %v475
      %v477 = vpop.f32.mrb[0].mxu0
      %478 = vmatprep.mubr.bf16.mxu0 0
      %479 = vmatmul.mubr.bf16.gmra.mrb[0].mxu0 %v380
      %v480 = vpop.f32.mrb[0].mxu0
      %v481 = vadd.f32 %v272, %v480
      %v482 = vpop.f32.mrb[0].mxu0
      %v483 = vpop.f32.mrb[0].mxu0
      %v484 = vadd.f32 %v272, %v483
      %v485 = vpop.f32.mrb[0].mxu0
      %486 = vmatprep.mubr.bf16.mxu0 0
      %487 = vmatmul.mubr.bf16.gmra.mrb[0].mxu0 %v383
      %v488 = vpop.f32.mrb[0].mxu0
      %v489 = vadd.f32 %v272, %v488
      %v490 = vpop.f32.mrb[0].mxu0
      %v491 = vpop.f32.mrb[0].mxu0
      %v492 = vadd.f32 %v272, %v491
      %v493 = vpop.f32.mrb[0].mxu0
      %494 = vmatprep.mubr.bf16.mxu0 0
      %495 = vmatmul.mubr.bf16.gmra.mrb[0].mxu0 %v386
      %v496 = vpop.f32.mrb[0].mxu0
      %v497 = vadd.f32 %v272, %v496
      %v498 = vpop.f32.mrb[0].mxu0
      %v499 = vpop.f32.mrb[0].mxu0
      %v500 = vadd.f32 %v272, %v499
      %v501 = vpop.f32.mrb[0].mxu0
      %502 = vmatprep.mubr.bf16.mxu0 0
      %503 = vmatmul.mubr.bf16.gmra.mrb[0].mxu0 %v389
      %v504 = vpop.f32.mrb[0].mxu0
      %v505 = vadd.f32 %v272, %v504
      %v506 = vpop.f32.mrb[0].mxu0
      %v507 = vpop.f32.mrb[0].mxu0
      %v508 = vadd.f32 %v272, %v507
      %v509 = vpop.f32.mrb[0].mxu0
      %510 = vmatprep.mubr.bf16.mxu0 0
      %511 = vmatmul.mubr.bf16.gmra.mrb[0].mxu0 %v392
      %v512 = vpop.f32.mrb[0].mxu0
      %v513 = vadd.f32 %v272, %v512
      %v514 = vpop.f32.mrb[0].mxu0
      %v515 = vpop.f32.mrb[0].mxu0
      %v516 = vadd.f32 %v272, %v515
      %v517 = vpop.f32.mrb[0].mxu0
      %518 = vmatprep.mubr.bf16.mxu0 0
      %519 = vmatmul.mubr.bf16.gmra.mrb[0].mxu0 %v395
      %v520 = vpop.f32.mrb[0].mxu0
      %v521 = vadd.f32 %v272, %v520
      %v522 = vpop.f32.mrb[0].mxu0
      %v523 = vpop.f32.mrb[0].mxu0
      %v524 = vadd.f32 %v272, %v523
      %v525 = vpop.f32.mrb[0].mxu0
      %526 = vmatprep.mubr.bf16.mxu0 0
      %527 = vmatmul.mubr.bf16.gmra.mrb[0].mxu0 %v398
      %v528 = vpop.f32.mrb[0].mxu0
      %v529 = vadd.f32 %v272, %v528
      %v530 = vpop.f32.mrb[0].mxu0
      %v531 = vpop.f32.mrb[0].mxu0
      %v532 = vadd.f32 %v272, %v531
      %v533 = vpop.f32.mrb[0].mxu0
      %534 = vmatprep.mubr.bf16.mxu0 0
      %535 = vmatmul.mubr.bf16.gmra.mrb[0].mxu0 %v401
      %v536 = vpop.f32.mrb[0].mxu0
      %v537 = vadd.f32 %v272, %v536
      %v538 = vpop.f32.mrb[0].mxu0
      %v539 = vpop.f32.mrb[0].mxu0
      %v540 = vadd.f32 %v272, %v539
      %v541 = vpop.f32.mrb[0].mxu0
      %542 = vmatprep.mubr.bf16.mxu0 0
      %543 = vmatmul.mubr.bf16.gmra.mrb[0].mxu0 %v404
      %v544 = vpop.f32.mrb[0].mxu0
      %v545 = vadd.f32 %v272, %v544
      %v546 = vpop.f32.mrb[0].mxu0
      %v547 = vpop.f32.mrb[0].mxu0
      %v548 = vadd.f32 %v272, %v547
      %v549 = vpop.f32.mrb[0].mxu0
      %550 = vmatprep.mubr.bf16.mxu0 0
      %551 = vmatmul.mubr.bf16.gmra.mrb[0].mxu0 %v407
      %v552 = vpop.f32.mrb[0].mxu0
      %v553 = vadd.f32 %v272, %v552
      %v554 = vpop.f32.mrb[0].mxu0
      %v555 = vpop.f32.mrb[0].mxu0
      %v556 = vadd.f32 %v272, %v555
      %v557 = vpop.f32.mrb[0].mxu0
      %558 = vmatprep.mubr.bf16.mxu0 0
      %559 = vmatmul.mubr.bf16.gmra.mrb[0].mxu0 %v410
      %v560 = vpop.f32.mrb[0].mxu0
      %v561 = vadd.f32 %v272, %v560
      %v562 = vpop.f32.mrb[0].mxu0
      %v563 = vpop.f32.mrb[0].mxu0
      %v564 = vadd.f32 %v272, %v563
      %v565 = vpop.f32.mrb[0].mxu0
      %566 = vmatprep.mubr.bf16.mxu0 0
      %567 = vmatmul.mubr.bf16.gmra.mrb[0].mxu0 %v413
      %v568 = vpop.f32.mrb[0].mxu0
      %v569 = vadd.f32 %v272, %v568
      %v570 = vpop.f32.mrb[0].mxu0
      %v571 = vpop.f32.mrb[0].mxu0
      %v572 = vadd.f32 %v272, %v571
      %v573 = vpop.f32.mrb[0].mxu0
      %574 = vmatprep.mubr.bf16.mxu0 0
      %575 = vmatmul.mubr.bf16.gmra.mrb[0].mxu0 %v416
      %v576 = vpop.f32.mrb[0].mxu0
      %v577 = vadd.f32 %v272, %v576
      %v578 = vpop.f32.mrb[0].mxu0
      %v579 = vpop.f32.mrb[0].mxu0
      %v580 = vadd.f32 %v272, %v579
      %v581 = vpop.f32.mrb[0].mxu0
      %582 = vdwg.mxu0
      %v583 = vmax.f32 %v457, 0.0
      %v584 = vmax.f32 %v460, 0.0
      %v585 = vmax.f32 %v465, 0.0
      %v586 = vmax.f32 %v468, 0.0
      %v587 = vmax.f32 %v473, 0.0
      %v588 = vmax.f32 %v476, 0.0
      %v589 = vmax.f32 %v481, 0.0
      %v590 = vmax.f32 %v484, 0.0
      %v591 = vmax.f32 %v489, 0.0
      %v592 = vmax.f32 %v492, 0.0
      %v593 = vmax.f32 %v497, 0.0
      %v594 = vmax.f32 %v500, 0.0
      %v595 = vmax.f32 %v505, 0.0
      %v596 = vmax.f32 %v508, 0.0
      %v597 = vmax.f32 %v513, 0.0
      %v598 = vmax.f32 %v516, 0.0
      %v599 = vmax.f32 %v521, 0.0
      %v600 = vmax.f32 %v524, 0.0
      %v601 = vmax.f32 %v529, 0.0
      %v602 = vmax.f32 %v532, 0.0
      %v603 = vmax.f32 %v537, 0.0
      %v604 = vmax.f32 %v540, 0.0
      %v605 = vmax.f32 %v545, 0.0
      %v606 = vmax.f32 %v548, 0.0
      %v607 = vmax.f32 %v553, 0.0
      %v608 = vmax.f32 %v556, 0.0
      %v609 = vmax.f32 %v561, 0.0
      %v610 = vmax.f32 %v564, 0.0
      %v611 = vmax.f32 %v569, 0.0
      %v612 = vmax.f32 %v572, 0.0
      %v613 = vmax.f32 %v577, 0.0
      %v614 = vmax.f32 %v580, 0.0
      %v615 = vpack.c.bf16 %v584, %v583
      %v616 = vpack.c.bf16 %v586, %v585
      %v617 = vpack.c.bf16 %v588, %v587
      %v618 = vpack.c.bf16 %v590, %v589
      %v619 = vpack.c.bf16 %v592, %v591
      %v620 = vpack.c.bf16 %v594, %v593
      %v621 = vpack.c.bf16 %v596, %v595
      %v622 = vpack.c.bf16 %v598, %v597
      %v623 = vpack.c.bf16 %v600, %v599
      %v624 = vpack.c.bf16 %v602, %v601
      %v625 = vpack.c.bf16 %v604, %v603
      %v626 = vpack.c.bf16 %v606, %v605
      %v627 = vpack.c.bf16 %v608, %v607
      %v628 = vpack.c.bf16 %v610, %v609
      %v629 = vpack.c.bf16 %v612, %v611
      %v630 = vpack.c.bf16 %v614, %v613
      %v647 = vunpack.c.l.b16 %v615
      %v648 = vunpack.c.h.b16 %v615
      %v649 = vunpack.c.l.b16 %v616
      %v650 = vunpack.c.h.b16 %v616
      %v651 = vunpack.c.l.b16 %v617
      %v652 = vunpack.c.h.b16 %v617
      %v653 = vunpack.c.l.b16 %v618
      %v654 = vunpack.c.h.b16 %v618
      %v655 = vunpack.c.l.b16 %v619
      %v656 = vunpack.c.h.b16 %v619
      %v657 = vunpack.c.l.b16 %v620
      %v658 = vunpack.c.h.b16 %v620
      %v659 = vunpack.c.l.b16 %v621
      %v660 = vunpack.c.h.b16 %v621
      %v661 = vunpack.c.l.b16 %v622
      %v662 = vunpack.c.h.b16 %v622
      %v663 = vunpack.c.l.b16 %v623
      %v664 = vunpack.c.h.b16 %v623
      %v665 = vunpack.c.l.b16 %v624
      %v666 = vunpack.c.h.b16 %v624
      %v667 = vunpack.c.l.b16 %v625
      %v668 = vunpack.c.h.b16 %v625
      %v669 = vunpack.c.l.b16 %v626
      %v670 = vunpack.c.h.b16 %v626
      %v671 = vunpack.c.l.b16 %v627
      %v672 = vunpack.c.h.b16 %v627
      %v673 = vunpack.c.l.b16 %v628
      %v674 = vunpack.c.h.b16 %v628
      %v675 = vunpack.c.l.b16 %v629
      %v676 = vunpack.c.h.b16 %v629
      %v677 = vunpack.c.l.b16 %v630
      %v678 = vunpack.c.h.b16 %v630
      %v679 = vpack.c.b16 %v647, %v647
      %v680 = vpack.c.b16 %v648, %v648
      %v681 = vpack.c.b16 %v649, %v649
      %v682 = vpack.c.b16 %v650, %v650
      %v683 = vpack.c.b16 %v651, %v651
      %v684 = vpack.c.b16 %v652, %v652
      %v685 = vpack.c.b16 %v653, %v653
      %v686 = vpack.c.b16 %v654, %v654
      %v687 = vpack.c.b16 %v655, %v655
      %v688 = vpack.c.b16 %v656, %v656
      %v689 = vpack.c.b16 %v657, %v657
      %v690 = vpack.c.b16 %v658, %v658
      %v691 = vpack.c.b16 %v659, %v659
      %v692 = vpack.c.b16 %v660, %v660
      %v693 = vpack.c.b16 %v661, %v661
      %v694 = vpack.c.b16 %v662, %v662
      %v695 = vpack.c.b16 %v663, %v663
      %v696 = vpack.c.b16 %v664, %v664
      %v697 = vpack.c.b16 %v665, %v665
      %v698 = vpack.c.b16 %v666, %v666
      %v699 = vpack.c.b16 %v667, %v667
      %v700 = vpack.c.b16 %v668, %v668
      %v701 = vpack.c.b16 %v669, %v669
      %v702 = vpack.c.b16 %v670, %v670
      %v703 = vpack.c.b16 %v671, %v671
      %v704 = vpack.c.b16 %v672, %v672
      %v705 = vpack.c.b16 %v673, %v673
      %v706 = vpack.c.b16 %v674, %v674
      %v707 = vpack.c.b16 %v675, %v675
      %v708 = vpack.c.b16 %v676, %v676
      %v709 = vpack.c.b16 %v677, %v677
      %v710 = vpack.c.b16 %v678, %v678
      %743 = vst [vmem:[%s223] sm:$0xf] %v679
      %744 = vst [vmem:[%s223 + $0x4] sm:$0xf] %v680
      %745 = vst [vmem:[%s223 + $0x8] sm:$0xf] %v681
      %746 = vst [vmem:[%s223 + $0xc] sm:$0xf] %v682
      %747 = vst [vmem:[%s223 + $0x10] sm:$0xf] %v683
      %748 = vst [vmem:[%s223 + $0x14] sm:$0xf] %v684
      %749 = vst [vmem:[%s223 + $0x18] sm:$0xf] %v685
      %750 = vst [vmem:[%s223 + $0x1c] sm:$0xf] %v686
      %751 = vst [vmem:[%s223 + $0x20] sm:$0xf] %v687
      %752 = vst [vmem:[%s223 + $0x24] sm:$0xf] %v688
      %753 = vst [vmem:[%s223 + $0x28] sm:$0xf] %v689
      %754 = vst [vmem:[%s223 + $0x2c] sm:$0xf] %v690
      %755 = vst [vmem:[%s223 + $0x30] sm:$0xf] %v691
      %756 = vst [vmem:[%s223 + $0x34] sm:$0xf] %v692
      %757 = vst [vmem:[%s223 + $0x38] sm:$0xf] %v693
      %758 = vst [vmem:[%s223 + $0x3c] sm:$0xf] %v694
      %759 = vst [vmem:[%s223 + $0x40] sm:$0xf] %v695
      %760 = vst [vmem:[%s223 + $0x44] sm:$0xf] %v696
      %761 = vst [vmem:[%s223 + $0x48] sm:$0xf] %v697
      %762 = vst [vmem:[%s223 + $0x4c] sm:$0xf] %v698
      %763 = vst [vmem:[%s223 + $0x50] sm:$0xf] %v699
      %764 = vst [vmem:[%s223 + $0x54] sm:$0xf] %v700
      %765 = vst [vmem:[%s223 + $0x58] sm:$0xf] %v701
      %766 = vst [vmem:[%s223 + $0x5c] sm:$0xf] %v702
      %767 = vst [vmem:[%s223 + $0x60] sm:$0xf] %v703
      %768 = vst [vmem:[%s223 + $0x64] sm:$0xf] %v704
      %769 = vst [vmem:[%s223 + $0x68] sm:$0xf] %v705
      %770 = vst [vmem:[%s223 + $0x6c] sm:$0xf] %v706
      %771 = vst [vmem:[%s223 + $0x70] sm:$0xf] %v707
      %772 = vst [vmem:[%s223 + $0x74] sm:$0xf] %v708
      %773 = vst [vmem:[%s223 + $0x78] sm:$0xf] %v709
      %774 = vst [vmem:[%s223 + $0x7c] sm:$0xf] %v710
      %s775 = smul.u32 32, %s20
      %p776 = scmp.lt.s32.totalorder %s19, 1
      %s777 = scalar_select %p776, %s19, 1
      %p778 = scmp.lt.s32.totalorder %s775, 31
      %s779 = scalar_select %p778, %s775, 31
      %p780 = scmp.lt.s32.totalorder %s21, 0
      %s781 = scalar_select %p780, %s21, 0
      %s782 = sadd.s32 %s781, %s779
      %s783 = smul.addr %s777, 32
      %s784 = sadd.s32 %s782, %s783
      %s785 = smul.addr %s784, 4
      %s786 = scalar_lea.vmem %s3, %s785
      // Predicated region
      $region33: #{conv_blk_forward.1} parent=31 // pred_check
        %p787 = pneg %p125
      $region34: #{conv_blk_forward.1} parent=31 // pred_check_branch
        %789 = sbr.rel (%p787) target = $region36
      $region35: #{conv_blk_forward.1} parent=31 // pred_region
        %s790 = smul.u32 32, %s20
      $region36: #{conv_blk_forward.1} parent=31 // pred_fallthru
        _
    $region32: #{conv_blk_forward.1} parent=5 // pred_fallthru
      _
    %p791 = scmp.le.s32.totalorder 2, %s9
    // Predicated region
    $region37: #{conv_blk_forward.1} parent=5 // pred_check
      %p792 = pneg %p791
    $region38: #{conv_blk_forward.1} parent=5 // pred_check_branch
      %794 = sbr.rel (%p792) target = $region40
    $region39: #{conv_blk_forward.1} parent=5 // pred_region
      %s795 = ssub.s32 %s9, 2
      // Predicated region
      $region41: #{conv_blk_forward.1} parent=39 // pred_check
        %p796 = pneg %p131
      $region42: #{conv_blk_forward.1} parent=39 // pred_check_branch
        %798 = sbr.rel (%p796) target = $region44
      $region43: #{conv_blk_forward.1} parent=39 // pred_region
        %s799 = smul.u32 32, %s23
        %p800 = scmp.lt.s32.totalorder %s22, 1
        %s801 = scalar_select %p800, %s22, 1
        %p802 = scmp.lt.s32.totalorder %s799, 31
        %s803 = scalar_select %p802, %s799, 31
        %p804 = scmp.lt.s32.totalorder %s24, 0
        %s805 = scalar_select %p804, %s24, 0
        %s806 = sadd.s32 %s805, %s803
        %s807 = smul.addr %s801, 32
        %s808 = sadd.s32 %s806, %s807
        %s809 = smul.addr %s808, 4
        %s810 = scalar_lea.vmem %s3, %s809
      $region44: #{conv_blk_forward.1} parent=39 // pred_fallthru
        _
    $region40: #{conv_blk_forward.1} parent=5 // pred_fallthru
      _
  $region6: #{conv_blk_forward.1} parent=0 // loop_footer
    %s13 = sadd.s32 1, %s9
  $region7: #{conv_blk_forward.1} parent=0 // loop_footer_branch
    %8 = sbr.rel target = $region3
  $region8: #{conv_blk_forward.1} parent=0 // loop_exit
    _

</llo_original>
